<compile_context>
chip_gen: v6e
topology: v6e:2x2x1
jax: 0.10.0
libtpu: 0.0.40
codegen_flags: <defaults>
</compile_context>

<pallas_src>
import math

import jax
import jax.numpy as jnp
from jax.experimental import pallas as pl
from jax.experimental.pallas import tpu as pltpu

_LANE = 128      # lane-dense output width (pad act_dim up to a multiple of this)
_MAX_TB = 512    # batch tile cap for the large-B throughput path


def _round_up(x, m):
    return ((x + m - 1) // m) * m


def _mlp_kernel(x_ref, w1_ref, b1_ref, w2_ref, b2_ref, w3_ref, b3_ref, o_ref):
    # x / w* are bf16 (MXU-native); accumulation is f32; bias add + ReLU in f32.
    x = x_ref[...]
    h1 = jnp.dot(x, w1_ref[...], preferred_element_type=jnp.float32) + b1_ref[...]
    h1 = jnp.maximum(h1, 0.0)
    h2 = jnp.dot(h1.astype(w2_ref.dtype), w2_ref[...],
                 preferred_element_type=jnp.float32) + b2_ref[...]
    h2 = jnp.maximum(h2, 0.0)
    out = jnp.dot(h2.astype(w3_ref.dtype), w3_ref[...],
                  preferred_element_type=jnp.float32) + b3_ref[...]
    o_ref[...] = out.astype(o_ref.dtype)


def policy_gradient_forward(x, params, *, compute_dtype=jnp.bfloat16,
                            block_b=_MAX_TB):
    """x: (B, obs_dim) float32; params: dict of w1,b1,w2,b2,w3,b3 (W is (in,out))."""
    w1, b1 = params["w1"], params["b1"]
    w2, b2 = params["w2"], params["b2"]
    w3, b3 = params["w3"], params["b3"]

    B, obs_dim = x.shape
    hidden = w1.shape[1]
    act_dim = w3.shape[1]

    # Lane-dense output: zero-pad final out_features up to a multiple of 128.
    act_pad = _round_up(max(act_dim, _LANE), _LANE)
    w3p = jnp.zeros((hidden, act_pad), w3.dtype).at[:, :act_dim].set(w3)
    b3p = jnp.zeros((1, act_pad), b3.dtype).at[:, :act_dim].set(b3)

    # Batch tile: multiple of 16 (bf16 sublane packing); cap at block_b.
    tb = min(_round_up(block_b, 16), _round_up(B, 16))
    b_padded = _round_up(B, tb)
    if b_padded != B:
        x = jnp.zeros((b_padded, obs_dim), x.dtype).at[:B].set(x)

    # Cast once in the wrapper (not per grid iteration): bf16 x/weights, f32 biases.
    xc = x.astype(compute_dtype)
    w1c, w2c, w3c = (w.astype(compute_dtype) for w in (w1, w2, w3p))
    b1f, b2f, b3f = (b.astype(jnp.float32) for b in (b1, b2, b3p))

    grid = (b_padded // tb,)

    def resident(arr):
        nd = arr.ndim
        return pl.BlockSpec(arr.shape, lambda i, _nd=nd: (0,) * _nd)

    flops = 2 * b_padded * (obs_dim * hidden + hidden * hidden + hidden * act_pad)
    bytes_accessed = (
        xc.size * xc.dtype.itemsize
        + sum(a.size * a.dtype.itemsize for a in (w1c, w2c, w3c, b1f, b2f, b3f))
        + b_padded * act_pad * 4
    )

    out = pl.pallas_call(
        _mlp_kernel,
        out_shape=jax.ShapeDtypeStruct((b_padded, act_pad), jnp.float32),
        grid=grid,
        in_specs=[
            pl.BlockSpec((tb, obs_dim), lambda i: (i, 0)),   # batch-tiled x
            resident(w1c), resident(b1f),                    # VMEM-resident weights
            resident(w2c), resident(b2f),
            resident(w3c), resident(b3f),
        ],
        out_specs=pl.BlockSpec((tb, act_pad), lambda i: (i, 0)),
        compiler_params=pltpu.CompilerParams(
            dimension_semantics=("parallel",),               # dual-TC sharding on v7x
        ),
        cost_estimate=pl.CostEstimate(
            flops=flops, transcendentals=0, bytes_accessed=bytes_accessed),
    )(xc, w1c, b1f, w2c, b2f, w3c, b3f)

    return out[:B, :act_dim]


def init_params(key, obs_dim, act_dim, hidden=64):
    """Deterministic init matching nn.Linear's U(-1/sqrt(fan_in), 1/sqrt(fan_in))."""
    def linear_init(k, fan_in, fan_out):
        kw, kb = jax.random.split(k)
        bound = 1.0 / math.sqrt(fan_in)
        w = jax.random.uniform(kw, (fan_in, fan_out), jnp.float32, -bound, bound)
        b = jax.random.uniform(kb, (1, fan_out), jnp.float32, -bound, bound)
        return w, b

    k1, k2, k3 = jax.random.split(key, 3)
    w1, b1 = linear_init(k1, obs_dim, hidden)
    w2, b2 = linear_init(k2, hidden, hidden)
    w3, b3 = linear_init(k3, hidden, act_dim)
    return {"w1": w1, "b1": b1, "w2": w2, "b2": b2, "w3": w3, "b3": b3}


def reference_forward(x, params, compute_dtype=None):
    """Pure-JAX reference; if compute_dtype is given, mirrors the kernel's casts."""
    def maybe(a):
        return a.astype(compute_dtype) if compute_dtype is not None else a
    h1 = jnp.maximum(
        jnp.dot(maybe(x), maybe(params["w1"]),
                preferred_element_type=jnp.float32) + params["b1"], 0.0)
    h2 = jnp.maximum(
        jnp.dot(maybe(h1), maybe(params["w2"]),
                preferred_element_type=jnp.float32) + params["b2"], 0.0)
    return (jnp.dot(maybe(h2), maybe(params["w3"]),
                    preferred_element_type=jnp.float32) + params["b3"])


if __name__ == "__main__":
    # Small env-like shapes: obs_dim=8, act_dim=4, batch=2 (matches the module spec).
    B, OBS_DIM, ACT_DIM = 2, 8, 4

    key = jax.random.PRNGKey(0)
    k_params, k_x, k_big = jax.random.split(key, 3)
    params = init_params(k_params, OBS_DIM, ACT_DIM)
    x = jax.random.normal(k_x, (B, OBS_DIM), dtype=jnp.float32)

    out = policy_gradient_forward(x, params)
    out = jax.block_until_ready(out)
    assert out.shape == (B, ACT_DIM), out.shape

    # Tight check vs a reference that mirrors the bf16-input / f32-accumulate math.
    ref_bf16 = reference_forward(x, params, compute_dtype=jnp.bfloat16)
    assert jnp.allclose(out, ref_bf16, atol=2e-3, rtol=2e-3), "mismatch vs bf16 reference"
    # Loose check vs the pure-f32 module semantics.
    ref_f32 = reference_forward(x, params)
    assert jnp.allclose(out, ref_f32, atol=5e-2, rtol=5e-2), "mismatch vs f32 reference"

    # Exercise the tiled / padded multi-grid-step path (non-multiple-of-tile batch).
    x_big = jax.random.normal(k_big, (600, OBS_DIM), dtype=jnp.float32)
    out_big = jax.block_until_ready(policy_gradient_forward(x_big, params))
    ref_big = reference_forward(x_big, params, compute_dtype=jnp.bfloat16)
    assert out_big.shape == (600, ACT_DIM)
    assert jnp.allclose(out_big, ref_big, atol=2e-3, rtol=2e-3), "mismatch on tiled path"

    print("KERNEL_OK")
</pallas_src>

<mosaic_0001>
module attributes {stable_mosaic.version = 11 : i64} {
  func.func @_mlp_kernel(%arg0: i32, %arg1: memref<16x8xbf16, #tpu.memory_space<vmem>>, %arg2: memref<8x64xbf16, #tpu.memory_space<vmem>>, %arg3: memref<1x64xf32, #tpu.memory_space<vmem>>, %arg4: memref<64x64xbf16, #tpu.memory_space<vmem>>, %arg5: memref<1x64xf32, #tpu.memory_space<vmem>>, %arg6: memref<64x128xbf16, #tpu.memory_space<vmem>>, %arg7: memref<1x128xf32, #tpu.memory_space<vmem>>, %arg8: memref<16x128xf32, #tpu.memory_space<vmem>>) attributes {dimension_semantics = [#tpu.dimension_semantics<parallel>], iteration_bounds = array<i64: 1>, scalar_prefetch = 0 : i64, scratch_operands = 0 : i64, tpu.core_type = #tpu.core_type<tc>, window_params = [{transform_indices = @transform_0, window_bounds = array<i64: 16, 8>}, {pipeline_mode = #tpu.pipeline_mode<synchronous>, transform_indices = @transform_1, window_bounds = array<i64: 8, 64>}, {pipeline_mode = #tpu.pipeline_mode<synchronous>, transform_indices = @transform_2, window_bounds = array<i64: 1, 64>}, {pipeline_mode = #tpu.pipeline_mode<synchronous>, transform_indices = @transform_3, window_bounds = array<i64: 64, 64>}, {pipeline_mode = #tpu.pipeline_mode<synchronous>, transform_indices = @transform_4, window_bounds = array<i64: 1, 64>}, {pipeline_mode = #tpu.pipeline_mode<synchronous>, transform_indices = @transform_5, window_bounds = array<i64: 64, 128>}, {pipeline_mode = #tpu.pipeline_mode<synchronous>, transform_indices = @transform_6, window_bounds = array<i64: 1, 128>}, {transform_indices = @transform_7, window_bounds = array<i64: 16, 128>}]} {
    %c0 = arith.constant 0 : index
    %c0_0 = arith.constant 0 : index
    %0 = vector.load %arg1[%c0, %c0_0] : memref<16x8xbf16, #tpu.memory_space<vmem>>, vector<16x8xbf16>
    %c0_1 = arith.constant 0 : index
    %c0_2 = arith.constant 0 : index
    %1 = vector.load %arg2[%c0_1, %c0_2] : memref<8x64xbf16, #tpu.memory_space<vmem>>, vector<8x64xbf16>
    %cst = arith.constant dense<0.000000e+00> : vector<16x64xf32>
    %2 = tpu.matmul %0, %1, %cst {dimension_numbers = #tpu.dot_dimension_numbers<[1], [0], [0], [1], [0, 0, 1, 1], [], []>} : vector<16x8xbf16>, vector<8x64xbf16>, vector<16x64xf32> -> vector<16x64xf32>
    %c0_3 = arith.constant 0 : index
    %c0_4 = arith.constant 0 : index
    %3 = vector.load %arg3[%c0_3, %c0_4] : memref<1x64xf32, #tpu.memory_space<vmem>>, vector<1x64xf32>
    %4 = vector.broadcast %3 : vector<1x64xf32> to vector<16x64xf32>
    %5 = arith.addf %2, %4 : vector<16x64xf32>
    %cst_5 = arith.constant 0.000000e+00 : f32
    %6 = vector.broadcast %cst_5 : f32 to vector<16x64xf32>
    %7 = arith.maximumf %5, %6 : vector<16x64xf32>
    %8 = arith.truncf %7 : vector<16x64xf32> to vector<16x64xbf16>
    %c0_6 = arith.constant 0 : index
    %c0_7 = arith.constant 0 : index
    %9 = vector.load %arg4[%c0_6, %c0_7] : memref<64x64xbf16, #tpu.memory_space<vmem>>, vector<64x64xbf16>
    %cst_8 = arith.constant dense<0.000000e+00> : vector<16x64xf32>
    %10 = tpu.matmul %8, %9, %cst_8 {dimension_numbers = #tpu.dot_dimension_numbers<[1], [0], [0], [1], [0, 0, 1, 1], [], []>} : vector<16x64xbf16>, vector<64x64xbf16>, vector<16x64xf32> -> vector<16x64xf32>
    %c0_9 = arith.constant 0 : index
    %c0_10 = arith.constant 0 : index
    %11 = vector.load %arg5[%c0_9, %c0_10] : memref<1x64xf32, #tpu.memory_space<vmem>>, vector<1x64xf32>
    %12 = vector.broadcast %11 : vector<1x64xf32> to vector<16x64xf32>
    %13 = arith.addf %10, %12 : vector<16x64xf32>
    %cst_11 = arith.constant 0.000000e+00 : f32
    %14 = vector.broadcast %cst_11 : f32 to vector<16x64xf32>
    %15 = arith.maximumf %13, %14 : vector<16x64xf32>
    %16 = arith.truncf %15 : vector<16x64xf32> to vector<16x64xbf16>
    %c0_12 = arith.constant 0 : index
    %c0_13 = arith.constant 0 : index
    %17 = vector.load %arg6[%c0_12, %c0_13] : memref<64x128xbf16, #tpu.memory_space<vmem>>, vector<64x128xbf16>
    %cst_14 = arith.constant dense<0.000000e+00> : vector<16x128xf32>
    %18 = tpu.matmul %16, %17, %cst_14 {dimension_numbers = #tpu.dot_dimension_numbers<[1], [0], [0], [1], [0, 0, 1, 1], [], []>} : vector<16x64xbf16>, vector<64x128xbf16>, vector<16x128xf32> -> vector<16x128xf32>
    %c0_15 = arith.constant 0 : index
    %c0_16 = arith.constant 0 : index
    %19 = vector.load %arg7[%c0_15, %c0_16] : memref<1x128xf32, #tpu.memory_space<vmem>>, vector<1x128xf32>
    %20 = vector.broadcast %19 : vector<1x128xf32> to vector<16x128xf32>
    %21 = arith.addf %18, %20 : vector<16x128xf32>
    %c0_17 = arith.constant 0 : index
    %c0_18 = arith.constant 0 : index
    %22 = vector.load %arg8[%c0_17, %c0_18] : memref<16x128xf32, #tpu.memory_space<vmem>>, vector<16x128xf32>
    tpu.vector_store %arg8[%c0_17, %c0_18], %21 {strides = array<i32>} : memref<16x128xf32, #tpu.memory_space<vmem>>, vector<16x128xf32>,
    return
  }
  func.func @transform_0(%arg0: i32) -> (i32, i32) {
    %c0_i32 = arith.constant 0 : i32
    %c0_i32_0 = arith.constant 0 : i32
    return %arg0, %c0_i32 : i32, i32
  }
  func.func @transform_1(%arg0: i32) -> (i32, i32) {
    %c0_i32 = arith.constant 0 : i32
    %c0_i32_0 = arith.constant 0 : i32
    %c0_i32_1 = arith.constant 0 : i32
    return %c0_i32, %c0_i32_0 : i32, i32
  }
  func.func @transform_2(%arg0: i32) -> (i32, i32) {
    %c0_i32 = arith.constant 0 : i32
    %c0_i32_0 = arith.constant 0 : i32
    %c0_i32_1 = arith.constant 0 : i32
    return %c0_i32, %c0_i32_0 : i32, i32
  }
  func.func @transform_3(%arg0: i32) -> (i32, i32) {
    %c0_i32 = arith.constant 0 : i32
    %c0_i32_0 = arith.constant 0 : i32
    %c0_i32_1 = arith.constant 0 : i32
    return %c0_i32, %c0_i32_0 : i32, i32
  }
  func.func @transform_4(%arg0: i32) -> (i32, i32) {
    %c0_i32 = arith.constant 0 : i32
    %c0_i32_0 = arith.constant 0 : i32
    %c0_i32_1 = arith.constant 0 : i32
    return %c0_i32, %c0_i32_0 : i32, i32
  }
  func.func @transform_5(%arg0: i32) -> (i32, i32) {
    %c0_i32 = arith.constant 0 : i32
    %c0_i32_0 = arith.constant 0 : i32
    %c0_i32_1 = arith.constant 0 : i32
    return %c0_i32, %c0_i32_0 : i32, i32
  }
  func.func @transform_6(%arg0: i32) -> (i32, i32) {
    %c0_i32 = arith.constant 0 : i32
    %c0_i32_0 = arith.constant 0 : i32
    %c0_i32_1 = arith.constant 0 : i32
    return %c0_i32, %c0_i32_0 : i32, i32
  }
  func.func @transform_7(%arg0: i32) -> (i32, i32) {
    %c0_i32 = arith.constant 0 : i32
    %c0_i32_0 = arith.constant 0 : i32
    return %arg0, %c0_i32 : i32, i32
  }
}

</mosaic_0001>

<llo_original>
// kernel: tpu_custom_call.1
$region0: #{tpu_custom_call.1}
  #allocation0 [shape = 'u32[]', space=smem, size = 0x4, offset = 0x4, fixed_abs, tag = 'smem constant byte address 0x4 - core index']
  #allocation1 [shape = 'u32[144,128]{1,0:T(1,128)}', space=vmem, size = 0x12000, scoped, tag = 'internal scratch']
  %s0 = inlined_call_operand.vmem [shape: bf16[16,8], index: 0, kind: input, shape index: {}]
  %s1 = inlined_call_operand.vmem [shape: bf16[8,64], index: 1, kind: input, shape index: {}]
  %s2 = inlined_call_operand.vmem [shape: f32[1,64], index: 2, kind: input, shape index: {}]
  %s3 = inlined_call_operand.hbm [shape: bf16[64,64], index: 3, kind: input, shape index: {}]
  %s4 = inlined_call_operand.vmem [shape: f32[1,64], index: 4, kind: input, shape index: {}]
  %s5 = inlined_call_operand.hbm [shape: bf16[64,128], index: 5, kind: input, shape index: {}]
  %s6 = inlined_call_operand.vmem [shape: f32[1,128], index: 6, kind: input, shape index: {}]
  %s7 = inlined_call_operand.hbm [shape: f32[16,128], index: 7, kind: output, shape index: {}]
  %s8 = sld [smem:[#allocation0]]
  $region46: #{tpu_custom_call.1} parent=0
    _
  %s10 = ssub.s32 1, %s8
  %s11 = scalar_select 0, %s10, %s8
  $region1: #{tpu_custom_call.1} parent=0
    #allocation2 [shape = 'u8[16384]{0}', space=vmem, size = 0x4000, scoped, tag = 'input window, operand 3, single buffered']
    #allocation3 [shape = 's32[1]{0}', space=sflag, size = 0x4, scoped, tag = 'scoped memory for tpu_custom_call.1']
    #allocation4 [shape = 's32[1]{0}', space=sflag, size = 0x4, scoped, tag = 'scoped memory for tpu_custom_call.1']
    #allocation5 [shape = 'u8[16384]{0}', space=vmem, size = 0x4000, scoped, tag = 'input window, operand 5, single buffered']
    #allocation6 [shape = 's32[1]{0}', space=sflag, size = 0x4, scoped, tag = 'scoped memory for tpu_custom_call.1']
    #allocation7 [shape = 'u8[8192]{0}', space=vmem, size = 0x2000, scoped, tag = 'output window, operand 0, single buffered']
    %12 = vsyncpa [#allocation3], 0
    %13 = vsyncpa [#allocation6], 0
    %14 = vsyncpa [#allocation4], 0
    // Predicated region
    $region2: #{tpu_custom_call.1} parent=1 // pred_check
      _
    $region3: #{tpu_custom_call.1} parent=1 // pred_check_branch
      %16 = sbr.rel (0) target = $region5
    $region4: #{tpu_custom_call.1} parent=1 // pred_region
      _
    $region5: #{tpu_custom_call.1} parent=1 // pred_fallthru
      _
    // Predicated region
    $region6: #{tpu_custom_call.1} parent=1 // pred_check
      _
    $region7: #{tpu_custom_call.1} parent=1 // pred_check_branch
      %18 = sbr.rel (0) target = $region9
    $region8: #{tpu_custom_call.1} parent=1 // pred_region
      _
    $region9: #{tpu_custom_call.1} parent=1 // pred_fallthru
      _
    // Predicated region
    $region10: #{tpu_custom_call.1} parent=1 // pred_check
      _
    $region11: #{tpu_custom_call.1} parent=1 // pred_check_branch
      %20 = sbr.rel (0) target = $region13
    $region12: #{tpu_custom_call.1} parent=1 // pred_region
      _
    $region13: #{tpu_custom_call.1} parent=1 // pred_fallthru
      _
    // Predicated region
    $region14: #{tpu_custom_call.1} parent=1 // pred_check
      _
    $region15: #{tpu_custom_call.1} parent=1 // pred_check_branch
      %22 = sbr.rel (0) target = $region17
    $region16: #{tpu_custom_call.1} parent=1 // pred_region
      %s24 = ssub.s32 512, 512
      %25 = vsyncadd [#allocation3], %s24
      %s26 = sshll.u32 [#allocation2], 4
      %s27 = int_to_ptr.vmem [resolvable:$true] %s26
      %32 = dma.hbm_to_vmem [thread:$0]  %s3, 512, %s27, [#allocation3], 64, 64, 4
    $region17: #{tpu_custom_call.1} parent=1 // pred_fallthru
      _
    // Predicated region
    $region18: #{tpu_custom_call.1} parent=1 // pred_check
      _
    $region19: #{tpu_custom_call.1} parent=1 // pred_check_branch
      %34 = sbr.rel (0) target = $region21
    $region20: #{tpu_custom_call.1} parent=1 // pred_region
      _
    $region21: #{tpu_custom_call.1} parent=1 // pred_fallthru
      _
    // Predicated region
    $region22: #{tpu_custom_call.1} parent=1 // pred_check
      _
    $region23: #{tpu_custom_call.1} parent=1 // pred_check_branch
      %36 = sbr.rel (0) target = $region25
    $region24: #{tpu_custom_call.1} parent=1 // pred_region
      %s38 = ssub.s32 512, 512
      %39 = vsyncadd [#allocation6], %s38
      %s40 = sshll.u32 [#allocation5], 4
      %s41 = int_to_ptr.vmem [resolvable:$true] %s40
      %46 = dma.hbm_to_vmem [thread:$0]  %s5, 512, %s41, [#allocation6], 64, 64, 4
    $region25: #{tpu_custom_call.1} parent=1 // pred_fallthru
      _
    // Predicated region
    $region26: #{tpu_custom_call.1} parent=1 // pred_check
      _
    $region27: #{tpu_custom_call.1} parent=1 // pred_check_branch
      %48 = sbr.rel (0) target = $region29
    $region28: #{tpu_custom_call.1} parent=1 // pred_region
      _
    $region29: #{tpu_custom_call.1} parent=1 // pred_fallthru
      _
    // Predicated region
    $region30: #{tpu_custom_call.1} parent=1 // pred_check
      _
    $region31: #{tpu_custom_call.1} parent=1 // pred_check_branch
      %50 = sbr.rel (0) target = $region33
    $region32: #{tpu_custom_call.1} parent=1 // pred_region
      %51 = dma.done [#allocation3], 512
    $region33: #{tpu_custom_call.1} parent=1 // pred_fallthru
      _
    // Predicated region
    $region34: #{tpu_custom_call.1} parent=1 // pred_check
      _
    $region35: #{tpu_custom_call.1} parent=1 // pred_check_branch
      %53 = sbr.rel (0) target = $region37
    $region36: #{tpu_custom_call.1} parent=1 // pred_region
      %54 = dma.done [#allocation6], 512
    $region37: #{tpu_custom_call.1} parent=1 // pred_fallthru
      _
    %v56 = vld [vmem:[%s0] sm:$0xf]
    %v57 = vld [vmem:[%s0 + $0x4] sm:$0xf]
    %v58 = vld [vmem:[%s1] sm:$0xf]
    %v59 = vld [vmem:[%s2] sm:$0x1]
    %v61 = vlaneseq
    %v62 = vshrl.u32 %v61, 7
    %v63 = vsub.s32 0, %v62
    %v64 = vrot.slane %v59, %v63
    %v68 = vunpack.c.l.b16 %v56
    %v69 = vunpack.c.l.b16 %v57
    %v70 = vpack.c.b16 %v69, %v68
    %vm71 = vcmask 64512
    %v73 = vsel %vm71, %v70, 0
    %vm75 = vcmask 1043456
    %v77 = vsel %vm75, %v58, 0
    %79 = vmatprep.subr.bf16.mxu0 0
    %80 = vmatpush1.bf16.msra.mxu0 0
    %81 = vmatprep.subr.bf16.mxu0 0
    %82 = vmatpush1.bf16.msra.mxu0 0
    %83 = vmatprep.subr.bf16.mxu0 0
    %84 = vmatpush1.bf16.msra.mxu0 0
    %85 = vmatprep.subr.bf16.mxu0 0
    %86 = vmatpush1.bf16.msra.mxu0 0
    %87 = vmatprep.subr.bf16.mxu0 0
    %88 = vmatpush1.bf16.msra.mxu0 0
    %89 = vmatprep.subr.bf16.mxu0 0
    %90 = vmatpush1.bf16.msra.mxu0 0
    %91 = vmatprep.subr.bf16.mxu0 0
    %92 = vmatpush1.bf16.msra.mxu0 0
    %93 = vmatprep.subr.bf16.mxu0 0
    %94 = vmatpush1.bf16.msra.mxu0 %v77
    %95 = vmatprep.subr.bf16.mxu0 0
    %96 = vmatpush2.bf16.msra.mxu0 0
    %97 = vmatprep.subr.bf16.mxu0 0
    %98 = vmatpush2.bf16.msra.mxu0 0
    %99 = vmatprep.subr.bf16.mxu0 0
    %100 = vmatpush2.bf16.msra.mxu0 0
    %101 = vmatprep.subr.bf16.mxu0 0
    %102 = vmatpush2.bf16.msra.mxu0 0
    %103 = vmatprep.subr.bf16.mxu0 0
    %104 = vmatpush2.bf16.msra.mxu0 0
    %105 = vmatprep.subr.bf16.mxu0 0
    %106 = vmatpush2.bf16.msra.mxu0 0
    %107 = vmatprep.subr.bf16.mxu0 0
    %108 = vmatpush2.bf16.msra.mxu0 0
    %109 = vmatprep.subr.bf16.mxu0 0
    %110 = vmatpush2.bf16.msra.mxu0 0
    %111 = vmatprep.mubr.bf16.mxu0 0
    %112 = vmatmul.mubr.bf16.gmra.mxu0 %v73
    %v113 = vpop.f32.mrf.mxu0
    %v114 = vadd.f32 %v64, %v113
    %v115 = vpop.f32.mrf.mxu0
    %v116 = vpop.f32.mrf.mxu0
    %v117 = vadd.f32 %v64, %v116
    %v118 = vpop.f32.mrf.mxu0
    %119 = vdwg.mxu0
    %v120 = vmax.f32 %v114, 0.0
    %v121 = vmax.f32 %v117, 0.0
    %v122 = vpack.c.bf16 %v121, %v120
    %v123 = vld [vmem:[#allocation2] sm:$0xf]
    %v124 = vld [vmem:[#allocation2 + $0x4] sm:$0xf]
    %v125 = vld [vmem:[#allocation2 + $0x8] sm:$0xf]
    %v126 = vld [vmem:[#allocation2 + $0xc] sm:$0xf]
    %v127 = vld [vmem:[#allocation2 + $0x10] sm:$0xf]
    %v128 = vld [vmem:[#allocation2 + $0x14] sm:$0xf]
    %v129 = vld [vmem:[#allocation2 + $0x18] sm:$0xf]
    %v130 = vld [vmem:[#allocation2 + $0x1c] sm:$0xf]
    %v131 = vld [vmem:[%s4] sm:$0x1]
    %v133 = vlaneseq
    %v134 = vshrl.u32 %v133, 7
    %v135 = vsub.s32 0, %v134
    %v136 = vrot.slane %v131, %v135
    %v146 = vunpack.c.l.b16 %v123
    %v147 = vunpack.c.l.b16 %v124
    %v148 = vunpack.c.l.b16 %v125
    %v149 = vunpack.c.l.b16 %v126
    %v150 = vunpack.c.l.b16 %v127
    %v151 = vunpack.c.l.b16 %v128
    %v152 = vunpack.c.l.b16 %v129
    %v153 = vunpack.c.l.b16 %v130
    %v154 = vpack.c.b16 %v147, %v146
    %v155 = vpack.c.b16 %v149, %v148
    %v156 = vpack.c.b16 %v151, %v150
    %v157 = vpack.c.b16 %v153, %v152
    %vm162 = vcmask 523264
    %v164 = vsel %vm162, %v122, 0
    %166 = vmatprep.subr.bf16.mxu0 0
    %167 = vmatpush1.bf16.msra.mxu0 0
    %168 = vmatprep.subr.bf16.mxu0 0
    %169 = vmatpush1.bf16.msra.mxu0 0
    %170 = vmatprep.subr.bf16.mxu0 0
    %171 = vmatpush1.bf16.msra.mxu0 0
    %172 = vmatprep.subr.bf16.mxu0 0
    %173 = vmatpush1.bf16.msra.mxu0 0
    %174 = vmatprep.subr.bf16.mxu0 0
    %175 = vmatpush1.bf16.msra.mxu0 %v157
    %176 = vmatprep.subr.bf16.mxu0 0
    %177 = vmatpush1.bf16.msra.mxu0 %v156
    %178 = vmatprep.subr.bf16.mxu0 0
    %179 = vmatpush1.bf16.msra.mxu0 %v155
    %180 = vmatprep.subr.bf16.mxu0 0
    %181 = vmatpush1.bf16.msra.mxu0 %v154
    %182 = vmatprep.subr.bf16.mxu0 0
    %183 = vmatpush2.bf16.msra.mxu0 0
    %184 = vmatprep.subr.bf16.mxu0 0
    %185 = vmatpush2.bf16.msra.mxu0 0
    %186 = vmatprep.subr.bf16.mxu0 0
    %187 = vmatpush2.bf16.msra.mxu0 0
    %188 = vmatprep.subr.bf16.mxu0 0
    %189 = vmatpush2.bf16.msra.mxu0 0
    %190 = vmatprep.subr.bf16.mxu0 0
    %191 = vmatpush2.bf16.msra.mxu0 0
    %192 = vmatprep.subr.bf16.mxu0 0
    %193 = vmatpush2.bf16.msra.mxu0 0
    %194 = vmatprep.subr.bf16.mxu0 0
    %195 = vmatpush2.bf16.msra.mxu0 0
    %196 = vmatprep.subr.bf16.mxu0 0
    %197 = vmatpush2.bf16.msra.mxu0 0
    %198 = vmatprep.mubr.bf16.mxu0 0
    %199 = vmatmul.mubr.bf16.gmra.mxu0 %v164
    %v200 = vpop.f32.mrf.mxu0
    %v201 = vadd.f32 %v136, %v200
    %v202 = vpop.f32.mrf.mxu0
    %v203 = vpop.f32.mrf.mxu0
    %v204 = vadd.f32 %v136, %v203
    %v205 = vpop.f32.mrf.mxu0
    %206 = vdwg.mxu0
    %v207 = vmax.f32 %v201, 0.0
    %v208 = vmax.f32 %v204, 0.0
    %v209 = vpack.c.bf16 %v208, %v207
    %v210 = vld [vmem:[#allocation5] sm:$0xf]
    %v211 = vld [vmem:[#allocation5 + $0x4] sm:$0xf]
    %v212 = vld [vmem:[#allocation5 + $0x8] sm:$0xf]
    %v213 = vld [vmem:[#allocation5 + $0xc] sm:$0xf]
    %v214 = vld [vmem:[#allocation5 + $0x10] sm:$0xf]
    %v215 = vld [vmem:[#allocation5 + $0x14] sm:$0xf]
    %v216 = vld [vmem:[#allocation5 + $0x18] sm:$0xf]
    %v217 = vld [vmem:[#allocation5 + $0x1c] sm:$0xf]
    %v218 = vld [vmem:[%s6] sm:$0x1]
    %v220 = vlaneseq
    %v221 = vshrl.u32 %v220, 7
    %v222 = vsub.s32 0, %v221
    %v223 = vrot.slane %v218, %v222
    %v233 = vunpack.c.l.b16 %v210
    %v234 = vunpack.c.l.b16 %v211
    %v235 = vunpack.c.l.b16 %v212
    %v236 = vunpack.c.l.b16 %v213
    %v237 = vunpack.c.l.b16 %v214
    %v238 = vunpack.c.l.b16 %v215
    %v239 = vunpack.c.l.b16 %v216
    %v240 = vunpack.c.l.b16 %v217
    %v241 = vpack.c.b16 %v234, %v233
    %v242 = vpack.c.b16 %v236, %v235
    %v243 = vpack.c.b16 %v238, %v237
    %v244 = vpack.c.b16 %v240, %v239
    %v250 = vsel %vm162, %v209, 0
    %252 = vmatprep.subr.bf16.mxu0 0
    %253 = vmatpush1.bf16.msra.mxu0 0
    %254 = vmatprep.subr.bf16.mxu0 0
    %255 = vmatpush1.bf16.msra.mxu0 0
    %256 = vmatprep.subr.bf16.mxu0 0
    %257 = vmatpush1.bf16.msra.mxu0 0
    %258 = vmatprep.subr.bf16.mxu0 0
    %259 = vmatpush1.bf16.msra.mxu0 0
    %260 = vmatprep.subr.bf16.mxu0 0
    %261 = vmatpush1.bf16.msra.mxu0 %v244
    %262 = vmatprep.subr.bf16.mxu0 0
    %263 = vmatpush1.bf16.msra.mxu0 %v243
    %264 = vmatprep.subr.bf16.mxu0 0
    %265 = vmatpush1.bf16.msra.mxu0 %v242
    %266 = vmatprep.subr.bf16.mxu0 0
    %267 = vmatpush1.bf16.msra.mxu0 %v241
    %268 = vmatprep.subr.bf16.mxu0 0
    %269 = vmatpush2.bf16.msra.mxu0 0
    %270 = vmatprep.subr.bf16.mxu0 0
    %271 = vmatpush2.bf16.msra.mxu0 0
    %272 = vmatprep.subr.bf16.mxu0 0
    %273 = vmatpush2.bf16.msra.mxu0 0
    %274 = vmatprep.subr.bf16.mxu0 0
    %275 = vmatpush2.bf16.msra.mxu0 0
    %276 = vmatprep.subr.bf16.mxu0 0
    %277 = vmatpush2.bf16.msra.mxu0 0
    %278 = vmatprep.subr.bf16.mxu0 0
    %279 = vmatpush2.bf16.msra.mxu0 0
    %280 = vmatprep.subr.bf16.mxu0 0
    %281 = vmatpush2.bf16.msra.mxu0 0
    %282 = vmatprep.subr.bf16.mxu0 0
    %283 = vmatpush2.bf16.msra.mxu0 0
    %284 = vmatprep.mubr.bf16.mxu0 0
    %285 = vmatmul.mubr.bf16.gmra.mxu0 %v250
    %v286 = vpop.f32.mrf.mxu0
    %v287 = vadd.f32 %v223, %v286
    %v288 = vpop.f32.mrf.mxu0
    %v289 = vpop.f32.mrf.mxu0
    %v290 = vadd.f32 %v223, %v289
    %v291 = vpop.f32.mrf.mxu0
    %292 = vdwg.mxu0
    %293 = vst [vmem:[#allocation7] sm:$0xff] %v287
    %294 = vst [vmem:[#allocation7 + $0x8] sm:$0xff] %v290
    // Predicated region
    $region38: #{tpu_custom_call.1} parent=1 // pred_check
      _
    $region39: #{tpu_custom_call.1} parent=1 // pred_check_branch
      %296 = sbr.rel (0) target = $region41
    $region40: #{tpu_custom_call.1} parent=1 // pred_region
      %s298 = ssub.s32 256, 256
      %299 = vsyncadd [#allocation4], %s298
      %s300 = sshll.u32 [#allocation7], 4
      %s301 = int_to_ptr.vmem [resolvable:$true] %s300
      %306 = dma.vmem_to_hbm [thread:$0]  %s301, 256, %s7, [#allocation4], 128, 128, 8
    $region41: #{tpu_custom_call.1} parent=1 // pred_fallthru
      _
    // Predicated region
    $region42: #{tpu_custom_call.1} parent=1 // pred_check
      _
    $region43: #{tpu_custom_call.1} parent=1 // pred_check_branch
      %308 = sbr.rel (0) target = $region45
    $region44: #{tpu_custom_call.1} parent=1 // pred_region
      %309 = dma.done [#allocation4], 256
    $region45: #{tpu_custom_call.1} parent=1 // pred_fallthru
      _
    %310 = vsyncpa [#allocation3], 1
    %311 = vsyncpa [#allocation6], 1
    %312 = vsyncpa [#allocation4], 1

</llo_original>
